<compile_context>
chip_gen: v5e
topology: v5e:2x2
jax: 0.10.0
libtpu: 0.0.40
codegen_flags: <defaults>
</compile_context>

<pallas_src>
import functools

import jax
import jax.numpy as jnp
from jax import lax
from jax.experimental import pallas as pl
from jax.experimental.pallas import tpu as pltpu


def _pool_classifier_kernel(f_ref, w1_ref, b1_ref, w2_ref, b2_ref, out_ref,
                            *, inv_thw):
    """One batch element per grid step.

    f_ref  : (THW, C)   pre-pool backbone features, channels lane-dense
    w1_ref : (C,  H1)   b1_ref : (1, H1)     classifier layer 1
    w2_ref : (H1, NC)   b2_ref : (1, NC)     classifier layer 2
    out_ref: (1, NC)    logits for this batch element
    """
    x = f_ref[...]                                                   # (THW, C)

    # AdaptiveAvgPool3d((1,1,1)) + flatten  ->  (1, C)
    pooled = jnp.sum(x, axis=0, keepdims=True) * inv_thw             # sublane reduce

    # Dropout (identity at inference) -> Linear -> ReLU
    h = jnp.dot(pooled, w1_ref[...],
                preferred_element_type=jnp.float32) + b1_ref[...]    # (1, H1)
    h = jnp.maximum(h, 0.0)

    # Dropout (identity) -> Linear -> logits
    logits = jnp.dot(h, w2_ref[...],
                     preferred_element_type=jnp.float32) + b2_ref[...]  # (1, NC)
    out_ref[...] = logits.astype(out_ref.dtype)


def enhanced_r3d_head(features_ncdhw, w1, b1, w2, b2):
    """Pooling + classifier head of EnhancedR3DModel.

    features_ncdhw : (N, C, T, H, W) float32 — r3d_18 pre-avgpool feature map
                     (PyTorch NCDHW layout; C = feature_dim = 512).
    w1 : (C, H1)   b1 : (1, H1)    (Linear(feature_dim, 512))
    w2 : (H1, NC)  b2 : (1, NC)    (Linear(512, num_classes))
    Returns logits of shape (N, NC).
    """
    N, C, T, H, W = features_ncdhw.shape
    H1 = w1.shape[1]
    NC = w2.shape[1]
    THW = T * H * W

    # Lane-dense layout: (N, THW, C) with C on the lane axis (512 = 4 x 128).
    f = jnp.transpose(features_ncdhw, (0, 2, 3, 4, 1)).reshape(N, THW, C)

    kernel = functools.partial(_pool_classifier_kernel, inv_thw=1.0 / float(THW))
    out = pl.pallas_call(
        kernel,
        out_shape=jax.ShapeDtypeStruct((N, 1, NC), features_ncdhw.dtype),
        grid=(N,),
        in_specs=[
            pl.BlockSpec((None, THW, C), lambda n: (n, 0, 0)),   # features (per batch)
            pl.BlockSpec((C, H1), lambda n: (0, 0)),             # w1 (fetched once)
            pl.BlockSpec((1, H1), lambda n: (0, 0)),             # b1
            pl.BlockSpec((H1, NC), lambda n: (0, 0)),            # w2
            pl.BlockSpec((1, NC), lambda n: (0, 0)),             # b2
        ],
        out_specs=pl.BlockSpec((None, 1, NC), lambda n: (n, 0, 0)),
        compiler_params=pltpu.CompilerParams(
            dimension_semantics=("parallel",)),
    )(f, w1, b1, w2, b2)
    return out.reshape(N, NC)


if __name__ == "__main__":
    # r3d_18 pre-avgpool features for a 16x224x224 clip are (N, 512, 2, 7, 7);
    # after AdaptiveAvgPool3d((1,1,1)) + flatten the feature_dim is 512,
    # matching the module's _calculate_feature_dimensions().
    N, C, T, H, W = 2, 512, 2, 7, 7
    HIDDEN, NUM_CLASSES = 512, 16

    key = jax.random.PRNGKey(0)
    ks = jax.random.split(key, 5)
    feats = jax.random.normal(ks[0], (N, C, T, H, W), jnp.float32)
    w1 = jax.random.normal(ks[1], (C, HIDDEN), jnp.float32) * 0.05
    b1 = jax.random.normal(ks[2], (1, HIDDEN), jnp.float32) * 0.05
    w2 = jax.random.normal(ks[3], (HIDDEN, NUM_CLASSES), jnp.float32) * 0.05
    b2 = jax.random.normal(ks[4], (1, NUM_CLASSES), jnp.float32) * 0.05

    out = enhanced_r3d_head(feats, w1, b1, w2, b2)
    out = jax.block_until_ready(out)

    # ---- pure-JAX reference: avgpool -> flatten -> Linear -> ReLU -> Linear ----
    pooled = jnp.mean(feats, axis=(2, 3, 4))                          # (N, C)
    h = jnp.maximum(jnp.dot(pooled, w1, precision=lax.Precision.HIGHEST) + b1, 0.0)
    ref = jnp.dot(h, w2, precision=lax.Precision.HIGHEST) + b2        # (N, NC)

    assert out.shape == (N, NUM_CLASSES)
    assert jnp.allclose(out, ref, rtol=1e-4, atol=1e-4), float(jnp.max(jnp.abs(out - ref)))
    print("KERNEL_OK")
</pallas_src>

<mosaic_0001>
module attributes {stable_mosaic.version = 11 : i64} {
  func.func @_pool_classifier_kernel(%arg0: i32, %arg1: memref<1x98x512xf32, #tpu.memory_space<vmem>>, %arg2: memref<512x512xf32, #tpu.memory_space<vmem>>, %arg3: memref<1x512xf32, #tpu.memory_space<vmem>>, %arg4: memref<512x16xf32, #tpu.memory_space<vmem>>, %arg5: memref<1x16xf32, #tpu.memory_space<vmem>>, %arg6: memref<1x1x16xf32, #tpu.memory_space<vmem>>) attributes {dimension_semantics = [#tpu.dimension_semantics<parallel>], iteration_bounds = array<i64: 2>, scalar_prefetch = 0 : i64, scratch_operands = 0 : i64, tpu.core_type = #tpu.core_type<tc>, window_params = [{transform_indices = @transform_0, window_bounds = array<i64: 1, 98, 512>}, {pipeline_mode = #tpu.pipeline_mode<synchronous>, transform_indices = @transform_1, window_bounds = array<i64: 512, 512>}, {pipeline_mode = #tpu.pipeline_mode<synchronous>, transform_indices = @transform_2, window_bounds = array<i64: 1, 512>}, {pipeline_mode = #tpu.pipeline_mode<synchronous>, transform_indices = @transform_3, window_bounds = array<i64: 512, 16>}, {pipeline_mode = #tpu.pipeline_mode<synchronous>, transform_indices = @transform_4, window_bounds = array<i64: 1, 16>}, {transform_indices = @transform_5, window_bounds = array<i64: 1, 1, 16>}]} {
    %c0 = arith.constant 0 : index
    %c0_0 = arith.constant 0 : index
    %c0_1 = arith.constant 0 : index
    %0 = vector.load %arg1[%c0, %c0_0, %c0_1] : memref<1x98x512xf32, #tpu.memory_space<vmem>>, vector<1x98x512xf32>
    %1 = vector.shape_cast %0 : vector<1x98x512xf32> to vector<98x512xf32>
    %cst = arith.constant dense<0.000000e+00> : vector<512xf32>
    %2 = vector.multi_reduction <add>, %1, %cst [0] : vector<98x512xf32> to vector<512xf32>
    %3 = vector.shape_cast %2 : vector<512xf32> to vector<1x512xf32>
    %cst_2 = arith.constant 0.0102040814 : f32
    %4 = vector.broadcast %cst_2 : f32 to vector<1x512xf32>
    %5 = arith.mulf %3, %4 : vector<1x512xf32>
    %c0_3 = arith.constant 0 : index
    %c0_4 = arith.constant 0 : index
    %6 = vector.load %arg2[%c0_3, %c0_4] : memref<512x512xf32, #tpu.memory_space<vmem>>, vector<512x512xf32>
    %cst_5 = arith.constant dense<0.000000e+00> : vector<1x512xf32>
    %7 = tpu.matmul %5, %6, %cst_5 {dimension_numbers = #tpu.dot_dimension_numbers<[1], [0], [0], [1], [0, 0, 1, 1], [], []>} : vector<1x512xf32>, vector<512x512xf32>, vector<1x512xf32> -> vector<1x512xf32>
    %c0_6 = arith.constant 0 : index
    %c0_7 = arith.constant 0 : index
    %8 = vector.load %arg3[%c0_6, %c0_7] : memref<1x512xf32, #tpu.memory_space<vmem>>, vector<1x512xf32>
    %9 = arith.addf %7, %8 : vector<1x512xf32>
    %cst_8 = arith.constant 0.000000e+00 : f32
    %10 = vector.broadcast %cst_8 : f32 to vector<1x512xf32>
    %11 = arith.maximumf %9, %10 : vector<1x512xf32>
    %c0_9 = arith.constant 0 : index
    %c0_10 = arith.constant 0 : index
    %12 = vector.load %arg4[%c0_9, %c0_10] : memref<512x16xf32, #tpu.memory_space<vmem>>, vector<512x16xf32>
    %cst_11 = arith.constant dense<0.000000e+00> : vector<1x16xf32>
    %13 = tpu.matmul %11, %12, %cst_11 {dimension_numbers = #tpu.dot_dimension_numbers<[1], [0], [0], [1], [0, 0, 1, 1], [], []>} : vector<1x512xf32>, vector<512x16xf32>, vector<1x16xf32> -> vector<1x16xf32>
    %c0_12 = arith.constant 0 : index
    %c0_13 = arith.constant 0 : index
    %14 = vector.load %arg5[%c0_12, %c0_13] : memref<1x16xf32, #tpu.memory_space<vmem>>, vector<1x16xf32>
    %15 = arith.addf %13, %14 : vector<1x16xf32>
    %c0_14 = arith.constant 0 : index
    %c0_15 = arith.constant 0 : index
    %c0_16 = arith.constant 0 : index
    %16 = vector.load %arg6[%c0_14, %c0_15, %c0_16] : memref<1x1x16xf32, #tpu.memory_space<vmem>>, vector<1x1x16xf32>
    %17 = vector.shape_cast %16 : vector<1x1x16xf32> to vector<1x16xf32>
    %18 = vector.shape_cast %15 : vector<1x16xf32> to vector<1x1x16xf32>
    tpu.vector_store %arg6[%c0_14, %c0_15, %c0_16], %18 {strides = array<i32>} : memref<1x1x16xf32, #tpu.memory_space<vmem>>, vector<1x1x16xf32>,
    return
  }
  func.func @transform_0(%arg0: i32) -> (i32, i32, i32) {
    %c0_i32 = arith.constant 0 : i32
    %c0_i32_0 = arith.constant 0 : i32
    %c0_i32_1 = arith.constant 0 : i32
    return %arg0, %c0_i32, %c0_i32_0 : i32, i32, i32
  }
  func.func @transform_1(%arg0: i32) -> (i32, i32) {
    %c0_i32 = arith.constant 0 : i32
    %c0_i32_0 = arith.constant 0 : i32
    %c0_i32_1 = arith.constant 0 : i32
    return %c0_i32, %c0_i32_0 : i32, i32
  }
  func.func @transform_2(%arg0: i32) -> (i32, i32) {
    %c0_i32 = arith.constant 0 : i32
    %c0_i32_0 = arith.constant 0 : i32
    %c0_i32_1 = arith.constant 0 : i32
    return %c0_i32, %c0_i32_0 : i32, i32
  }
  func.func @transform_3(%arg0: i32) -> (i32, i32) {
    %c0_i32 = arith.constant 0 : i32
    %c0_i32_0 = arith.constant 0 : i32
    %c0_i32_1 = arith.constant 0 : i32
    return %c0_i32, %c0_i32_0 : i32, i32
  }
  func.func @transform_4(%arg0: i32) -> (i32, i32) {
    %c0_i32 = arith.constant 0 : i32
    %c0_i32_0 = arith.constant 0 : i32
    %c0_i32_1 = arith.constant 0 : i32
    return %c0_i32, %c0_i32_0 : i32, i32
  }
  func.func @transform_5(%arg0: i32) -> (i32, i32, i32) {
    %c0_i32 = arith.constant 0 : i32
    %c0_i32_0 = arith.constant 0 : i32
    %c0_i32_1 = arith.constant 0 : i32
    return %arg0, %c0_i32, %c0_i32_0 : i32, i32, i32
  }
}

</mosaic_0001>

<llo_original>
// kernel: tpu_custom_call.1
$region0: #{tpu_custom_call.1}
  #allocation0 [shape = 'u32[]', space=smem, size = 0x4, offset = 0x4, fixed_abs, tag = 'smem constant byte address 0x4 - core index']
  #allocation1 [shape = 'u32[72,128]{1,0:T(1,128)}', space=vmem, size = 0x9000, scoped, tag = 'internal scratch']
  %s0 = inlined_call_operand.vmem [shape: f32[2,98,512], index: 0, kind: input, shape index: {}]
  %s1 = inlined_call_operand.vmem [shape: f32[512,512], index: 1, kind: input, shape index: {}]
  %s2 = inlined_call_operand.vmem [shape: f32[1,512], index: 2, kind: input, shape index: {}]
  %s3 = inlined_call_operand.vmem [shape: f32[512,16], index: 3, kind: input, shape index: {}]
  %s4 = inlined_call_operand.vmem [shape: f32[1,16], index: 4, kind: input, shape index: {}]
  %s5 = inlined_call_operand.hbm [shape: f32[2,1,16], index: 5, kind: output, shape index: {}]
  %s6 = sld [smem:[#allocation0]]
  $region53: #{tpu_custom_call.1} parent=0
    _
  %s8 = ssub.s32 1, %s6
  %s9 = scalar_select 0, %s8, %s6
  $region1: #{tpu_custom_call.1} parent=0
    #allocation2 [shape = 'u8[1024]{0}', space=vmem, size = 0x400, scoped, tag = 'output window, operand 0']
    #allocation3 [shape = 's32[2]{0}', space=sflag, size = 0x8, scoped, tag = 'scoped memory for tpu_custom_call.1']
    %10 = vsyncpa [#allocation3], 0
    %s11 = scalar_lea.sflag [#allocation3], 1
    %12 = vsyncpa %s11, 0
    loop: start=0, step=1, limit=4
    $region2: #{tpu_custom_call.1} parent=1 // loop_pre_header
      _
    $region3: #{tpu_custom_call.1} parent=1 // loop_header
      %s14 = sphi 0, %s18
      %p15 = scmp.ge.s32.totalorder %s14, 4
      %s24 = sphi 0, %s26
      %s27 = sphi 0, %s24
      %s28 = sphi 0, %s27
      %s44 = sphi 0, %s28
      %s48 = sphi 0, %s48
      %s50 = sphi 0, %s48
      %s51 = sphi 0, %s50
      %s65 = sphi 0, %s51
      %s69 = sphi 0, %s69
      %s71 = sphi 0, %s69
      %s72 = sphi 0, %s71
      %s86 = sphi 0, %s72
      %s90 = sphi 0, %s90
      %s92 = sphi 0, %s90
      %s93 = sphi 0, %s92
      %s107 = sphi 0, %s93
      %s111 = sphi 0, %s111
      %s113 = sphi 0, %s111
      %s114 = sphi 0, %s113
      %s128 = sphi 0, %s114
      %s134 = sphi 0, %s136
      %s137 = sphi 0, %s134
      %s138 = sphi 0, %s137
      %s154 = sphi 0, %s138
    $region4: #{tpu_custom_call.1} parent=1 // loop_header_branch
      %17 = sbr.rel (%p15) target = $region8
    $region5: #{tpu_custom_call.1} parent=1 // loop_body
      %s19 = ssub.s32 %s14, 1
      %s20 = ssub.s32 %s14, 2
      %s21 = sadd.s32 %s14, 1
      %s22 = ssub.s32 %s14, %s21
      %p23 = scmp.eq.s32.totalorder %s22, 0
      %s25 = sadd.s32 %s24, 1
      %s26 = scalar_select %p23, %s24, %s25
      %p29 = pneg %p23
      %p30 = scmp.eq.s32.totalorder %s14, 1
      %p31 = por %p29, %p30
      %p32 = scmp.ne.s32.totalorder %s24, %s27
      %p33 = scmp.eq.s32.totalorder %s14, 0
      %p34 = por %p32, %p33
      %p35 = scmp.ne.s32.totalorder %s24, %s27
      %p36 = scmp.eq.s32.totalorder %s19, 1
      %p37 = por %p35, %p36
      %p38 = scmp.ne.s32.totalorder %s27, %s28
      %p39 = scmp.eq.s32.totalorder %s19, 0
      %p40 = por %p38, %p39
      %p41 = scmp.ne.s32.totalorder %s27, %s28
      %p42 = scmp.eq.s32.totalorder %s20, 1
      %p43 = por %p41, %p42
      %p45 = scmp.ne.s32.totalorder %s28, %s44
      %p46 = scmp.eq.s32.totalorder %s20, 0
      %p47 = por %p45, %p46
      %s49 = sadd.s32 %s48, 1
      %p52 = scmp.eq.s32.totalorder %s14, 1
      %p53 = scmp.ne.s32.totalorder %s48, %s50
      %p54 = scmp.eq.s32.totalorder %s14, 0
      %p55 = por %p53, %p54
      %p56 = scmp.ne.s32.totalorder %s48, %s50
      %p57 = scmp.eq.s32.totalorder %s19, 1
      %p58 = por %p56, %p57
      %p59 = scmp.ne.s32.totalorder %s50, %s51
      %p60 = scmp.eq.s32.totalorder %s19, 0
      %p61 = por %p59, %p60
      %p62 = scmp.ne.s32.totalorder %s50, %s51
      %p63 = scmp.eq.s32.totalorder %s20, 1
      %p64 = por %p62, %p63
      %p66 = scmp.ne.s32.totalorder %s51, %s65
      %p67 = scmp.eq.s32.totalorder %s20, 0
      %p68 = por %p66, %p67
      %s70 = sadd.s32 %s69, 1
      %p73 = scmp.eq.s32.totalorder %s14, 1
      %p74 = scmp.ne.s32.totalorder %s69, %s71
      %p75 = scmp.eq.s32.totalorder %s14, 0
      %p76 = por %p74, %p75
      %p77 = scmp.ne.s32.totalorder %s69, %s71
      %p78 = scmp.eq.s32.totalorder %s19, 1
      %p79 = por %p77, %p78
      %p80 = scmp.ne.s32.totalorder %s71, %s72
      %p81 = scmp.eq.s32.totalorder %s19, 0
      %p82 = por %p80, %p81
      %p83 = scmp.ne.s32.totalorder %s71, %s72
      %p84 = scmp.eq.s32.totalorder %s20, 1
      %p85 = por %p83, %p84
      %p87 = scmp.ne.s32.totalorder %s72, %s86
      %p88 = scmp.eq.s32.totalorder %s20, 0
      %p89 = por %p87, %p88
      %s91 = sadd.s32 %s90, 1
      %p94 = scmp.eq.s32.totalorder %s14, 1
      %p95 = scmp.ne.s32.totalorder %s90, %s92
      %p96 = scmp.eq.s32.totalorder %s14, 0
      %p97 = por %p95, %p96
      %p98 = scmp.ne.s32.totalorder %s90, %s92
      %p99 = scmp.eq.s32.totalorder %s19, 1
      %p100 = por %p98, %p99
      %p101 = scmp.ne.s32.totalorder %s92, %s93
      %p102 = scmp.eq.s32.totalorder %s19, 0
      %p103 = por %p101, %p102
      %p104 = scmp.ne.s32.totalorder %s92, %s93
      %p105 = scmp.eq.s32.totalorder %s20, 1
      %p106 = por %p104, %p105
      %p108 = scmp.ne.s32.totalorder %s93, %s107
      %p109 = scmp.eq.s32.totalorder %s20, 0
      %p110 = por %p108, %p109
      %s112 = sadd.s32 %s111, 1
      %p115 = scmp.eq.s32.totalorder %s14, 1
      %p116 = scmp.ne.s32.totalorder %s111, %s113
      %p117 = scmp.eq.s32.totalorder %s14, 0
      %p118 = por %p116, %p117
      %p119 = scmp.ne.s32.totalorder %s111, %s113
      %p120 = scmp.eq.s32.totalorder %s19, 1
      %p121 = por %p119, %p120
      %p122 = scmp.ne.s32.totalorder %s113, %s114
      %p123 = scmp.eq.s32.totalorder %s19, 0
      %p124 = por %p122, %p123
      %p125 = scmp.ne.s32.totalorder %s113, %s114
      %p126 = scmp.eq.s32.totalorder %s20, 1
      %p127 = por %p125, %p126
      %p129 = scmp.ne.s32.totalorder %s114, %s128
      %p130 = scmp.eq.s32.totalorder %s20, 0
      %p131 = por %p129, %p130
      %s132 = ssub.s32 %s14, %s21
      %p133 = scmp.eq.s32.totalorder %s132, 0
      %s135 = sadd.s32 %s134, 1
      %s136 = scalar_select %p133, %s134, %s135
      %p139 = pneg %p133
      %p140 = scmp.eq.s32.totalorder %s14, 1
      %p141 = por %p139, %p140
      %p142 = scmp.ne.s32.totalorder %s134, %s137
      %p143 = scmp.eq.s32.totalorder %s14, 0
      %p144 = por %p142, %p143
      %p145 = scmp.ne.s32.totalorder %s134, %s137
      %p146 = scmp.eq.s32.totalorder %s19, 1
      %p147 = por %p145, %p146
      %p148 = scmp.ne.s32.totalorder %s137, %s138
      %p149 = scmp.eq.s32.totalorder %s19, 0
      %p150 = por %p148, %p149
      %p151 = scmp.ne.s32.totalorder %s137, %s138
      %p152 = scmp.eq.s32.totalorder %s20, 1
      %p153 = por %p151, %p152
      %p155 = scmp.ne.s32.totalorder %s138, %s154
      %p156 = scmp.eq.s32.totalorder %s20, 0
      %p157 = por %p155, %p156
      %p158 = scmp.le.s32.totalorder 1, %s14
      %p159 = scmp.lt.s32.totalorder %s14, 3
      %p160 = pnand %p158, %p159
      %p161 = pneg %p160
      // Predicated region
      $region9: #{tpu_custom_call.1} parent=5 // pred_check
        _
      $region10: #{tpu_custom_call.1} parent=5 // pred_check_branch
        %163 = sbr.rel (%p160) target = $region12
      $region11: #{tpu_custom_call.1} parent=5 // pred_region
        %s164 = ssub.s32 %s14, 1
        // Predicated region
        $region13: #{tpu_custom_call.1} parent=11 // pred_check
          %p165 = pneg %p61
        $region14: #{tpu_custom_call.1} parent=11 // pred_check_branch
          %167 = sbr.rel (%p165) target = $region16
        $region15: #{tpu_custom_call.1} parent=11 // pred_region
          _
        $region16: #{tpu_custom_call.1} parent=11 // pred_fallthru
          _
        // Predicated region
        $region17: #{tpu_custom_call.1} parent=11 // pred_check
          %p168 = pneg %p82
        $region18: #{tpu_custom_call.1} parent=11 // pred_check_branch
          %170 = sbr.rel (%p168) target = $region20
        $region19: #{tpu_custom_call.1} parent=11 // pred_region
          _
        $region20: #{tpu_custom_call.1} parent=11 // pred_fallthru
          _
        // Predicated region
        $region21: #{tpu_custom_call.1} parent=11 // pred_check
          %p171 = pneg %p103
        $region22: #{tpu_custom_call.1} parent=11 // pred_check_branch
          %173 = sbr.rel (%p171) target = $region24
        $region23: #{tpu_custom_call.1} parent=11 // pred_region
          _
        $region24: #{tpu_custom_call.1} parent=11 // pred_fallthru
          _
        // Predicated region
        $region25: #{tpu_custom_call.1} parent=11 // pred_check
          %p174 = pneg %p124
        $region26: #{tpu_custom_call.1} parent=11 // pred_check_branch
          %176 = sbr.rel (%p174) target = $region28
        $region27: #{tpu_custom_call.1} parent=11 // pred_region
          _
        $region28: #{tpu_custom_call.1} parent=11 // pred_fallthru
          _
      $region12: #{tpu_custom_call.1} parent=5 // pred_fallthru
        _
      %p177 = scmp.lt.s32.totalorder %s14, 2
      // Predicated region
      $region29: #{tpu_custom_call.1} parent=5 // pred_check
        %p178 = pneg %p177
      $region30: #{tpu_custom_call.1} parent=5 // pred_check_branch
        %180 = sbr.rel (%p178) target = $region32
      $region31: #{tpu_custom_call.1} parent=5 // pred_region
        // Predicated region
        $region33: #{tpu_custom_call.1} parent=31 // pred_check
          %p181 = pneg %p34
        $region34: #{tpu_custom_call.1} parent=31 // pred_check_branch
          %183 = sbr.rel (%p181) target = $region36
        $region35: #{tpu_custom_call.1} parent=31 // pred_region
          %p184 = scmp.lt.s32.totalorder %s14, 1
          %s185 = scalar_select %p184, %s14, 1
          %s186 = smul.addr %s185, 52
          %s187 = smul.addr %s186, 8
          %s188 = scalar_lea.vmem %s0, %s187
        $region36: #{tpu_custom_call.1} parent=31 // pred_fallthru
          _
      $region32: #{tpu_custom_call.1} parent=5 // pred_fallthru
        _
      %p189 = scmp.le.s32.totalorder 1, %s14
      %p190 = scmp.lt.s32.totalorder %s14, 3
      %p191 = pnand %p189, %p190
      %p192 = pneg %p191
      // Predicated region
      $region37: #{tpu_custom_call.1} parent=5 // pred_check
        _
      $region38: #{tpu_custom_call.1} parent=5 // pred_check_branch
        %194 = sbr.rel (%p191) target = $region40
      $region39: #{tpu_custom_call.1} parent=5 // pred_region
        %s195 = ssub.s32 %s14, 1
        %p196 = scmp.lt.s32.totalorder %s19, 1
        %s197 = scalar_select %p196, %s19, 1
        %s198 = smul.addr %s197, 52
        %s199 = smul.addr %s198, 8
        %s200 = scalar_lea.vmem %s0, %s199
        %p201 = pneg %p40
        %p202 = pneg %p37
        %p203 = pneg %p61
        %p204 = pneg %p58
        %p205 = pneg %p82
        %p206 = pneg %p79
        %p207 = pneg %p103
        %p208 = pneg %p100
        %p209 = pneg %p124
        %p210 = pneg %p121
        %p211 = pneg %p150
        %p212 = pneg %p147
        %s213 = sand.u32 %s137, 1
        %s214 = scalar_lea.sflag [#allocation3], %s213
        %s215 = sand.u32 %s137, 1
        %s216 = scalar_lea.vmem [#allocation2], %s215
        %p217 = scmp.lt.s32.totalorder %s19, 1
        %s218 = scalar_select %p217, %s19, 1
        %s219 = smul.addr %s218, 52
        %s220 = smul.addr %s219, 8
        %s221 = scalar_lea.vmem %s0, %s220
        %v222 = vld [vmem:[%s221] sm:$0xff]
        %v223 = vld [vmem:[%s221 + $0x8] sm:$0xff]
        %v224 = vld [vmem:[%s221 + $0x10] sm:$0xff]
        %v225 = vld [vmem:[%s221 + $0x18] sm:$0xff]
        %v226 = vld [vmem:[%s221 + $0x20] sm:$0xff]
        %v227 = vld [vmem:[%s221 + $0x28] sm:$0xff]
        %v228 = vld [vmem:[%s221 + $0x30] sm:$0xff]
        %v229 = vld [vmem:[%s221 + $0x38] sm:$0xff]
        %v230 = vld [vmem:[%s221 + $0x40] sm:$0xff]
        %v231 = vld [vmem:[%s221 + $0x48] sm:$0xff]
        %v232 = vld [vmem:[%s221 + $0x50] sm:$0xff]
        %v233 = vld [vmem:[%s221 + $0x58] sm:$0xff]
        %v234 = vld [vmem:[%s221 + $0x60] sm:$0xff]
        %v235 = vld [vmem:[%s221 + $0x68] sm:$0xff]
        %v236 = vld [vmem:[%s221 + $0x70] sm:$0xff]
        %v237 = vld [vmem:[%s221 + $0x78] sm:$0xff]
        %v238 = vld [vmem:[%s221 + $0x80] sm:$0xff]
        %v239 = vld [vmem:[%s221 + $0x88] sm:$0xff]
        %v240 = vld [vmem:[%s221 + $0x90] sm:$0xff]
        %v241 = vld [vmem:[%s221 + $0x98] sm:$0xff]
        %v242 = vld [vmem:[%s221 + $0xa0] sm:$0xff]
        %v243 = vld [vmem:[%s221 + $0xa8] sm:$0xff]
        %v244 = vld [vmem:[%s221 + $0xb0] sm:$0xff]
        %v245 = vld [vmem:[%s221 + $0xb8] sm:$0xff]
        %v246 = vld [vmem:[%s221 + $0xc0] sm:$0xff]
        %v247 = vld [vmem:[%s221 + $0xc8] sm:$0xff]
        %v248 = vld [vmem:[%s221 + $0xd0] sm:$0xff]
        %v249 = vld [vmem:[%s221 + $0xd8] sm:$0xff]
        %v250 = vld [vmem:[%s221 + $0xe0] sm:$0xff]
        %v251 = vld [vmem:[%s221 + $0xe8] sm:$0xff]
        %v252 = vld [vmem:[%s221 + $0xf0] sm:$0xff]
        %v253 = vld [vmem:[%s221 + $0xf8] sm:$0xff]
        %v254 = vld [vmem:[%s221 + $0x100] sm:$0xff]
        %v255 = vld [vmem:[%s221 + $0x108] sm:$0xff]
        %v256 = vld [vmem:[%s221 + $0x110] sm:$0xff]
        %v257 = vld [vmem:[%s221 + $0x118] sm:$0xff]
        %v258 = vld [vmem:[%s221 + $0x120] sm:$0xff]
        %v259 = vld [vmem:[%s221 + $0x128] sm:$0xff]
        %v260 = vld [vmem:[%s221 + $0x130] sm:$0xff]
        %v261 = vld [vmem:[%s221 + $0x138] sm:$0xff]
        %v262 = vld [vmem:[%s221 + $0x140] sm:$0xff]
        %v263 = vld [vmem:[%s221 + $0x148] sm:$0xff]
        %v264 = vld [vmem:[%s221 + $0x150] sm:$0xff]
        %v265 = vld [vmem:[%s221 + $0x158] sm:$0xff]
        %v266 = vld [vmem:[%s221 + $0x160] sm:$0xff]
        %v267 = vld [vmem:[%s221 + $0x168] sm:$0xff]
        %v268 = vld [vmem:[%s221 + $0x170] sm:$0xff]
        %v269 = vld [vmem:[%s221 + $0x178] sm:$0xff]
        %v270 = vld [vmem:[%s221 + $0x180] sm:$0x3]
        %v271 = vld [vmem:[%s221 + $0x188] sm:$0x3]
        %v272 = vld [vmem:[%s221 + $0x190] sm:$0x3]
        %v273 = vld [vmem:[%s221 + $0x198] sm:$0x3]
        %v274 = vadd.f32 %v222, %v226
        %v275 = vadd.f32 %v274, %v230
        %v276 = vadd.f32 %v275, %v234
        %v277 = vadd.f32 %v276, %v238
        %v278 = vadd.f32 %v277, %v242
        %v279 = vadd.f32 %v278, %v246
        %v280 = vadd.f32 %v279, %v250
        %v281 = vadd.f32 %v280, %v254
        %v282 = vadd.f32 %v281, %v258
        %v283 = vadd.f32 %v282, %v262
        %v284 = vadd.f32 %v283, %v266
        %vm285 = vcmask 1041408
        %v286 = vsel %vm285, %v270, 0.0
        %v287 = vadd.f32 %v284, %v286
        %v288 = vrot.slane %v287, 4
        %v289 = vadd.f32 %v287, %v288
        %v290 = vrot.slane %v289, 2
        %v291 = vadd.f32 %v289, %v290
        %v292 = vrot.slane %v291, 1
        %v293 = vadd.f32 %v291, %v292
        %v294 = vadd.f32 %v223, %v227
        %v295 = vadd.f32 %v294, %v231
        %v296 = vadd.f32 %v295, %v235
        %v297 = vadd.f32 %v296, %v239
        %v298 = vadd.f32 %v297, %v243
        %v299 = vadd.f32 %v298, %v247
        %v300 = vadd.f32 %v299, %v251
        %v301 = vadd.f32 %v300, %v255
        %v302 = vadd.f32 %v301, %v259
        %v303 = vadd.f32 %v302, %v263
        %v304 = vadd.f32 %v303, %v267
        %v305 = vsel %vm285, %v271, 0.0
        %v306 = vadd.f32 %v304, %v305
        %v307 = vrot.slane %v306, 4
        %v308 = vadd.f32 %v306, %v307
        %v309 = vrot.slane %v308, 2
        %v310 = vadd.f32 %v308, %v309
        %v311 = vrot.slane %v310, 1
        %v312 = vadd.f32 %v310, %v311
        %v313 = vadd.f32 %v224, %v228
        %v314 = vadd.f32 %v313, %v232
        %v315 = vadd.f32 %v314, %v236
        %v316 = vadd.f32 %v315, %v240
        %v317 = vadd.f32 %v316, %v244
        %v318 = vadd.f32 %v317, %v248
        %v319 = vadd.f32 %v318, %v252
        %v320 = vadd.f32 %v319, %v256
        %v321 = vadd.f32 %v320, %v260
        %v322 = vadd.f32 %v321, %v264
        %v323 = vadd.f32 %v322, %v268
        %v324 = vsel %vm285, %v272, 0.0
        %v325 = vadd.f32 %v323, %v324
        %v326 = vrot.slane %v325, 4
        %v327 = vadd.f32 %v325, %v326
        %v328 = vrot.slane %v327, 2
        %v329 = vadd.f32 %v327, %v328
        %v330 = vrot.slane %v329, 1
        %v331 = vadd.f32 %v329, %v330
        %v332 = vadd.f32 %v225, %v229
        %v333 = vadd.f32 %v332, %v233
        %v334 = vadd.f32 %v333, %v237
        %v335 = vadd.f32 %v334, %v241
        %v336 = vadd.f32 %v335, %v245
        %v337 = vadd.f32 %v336, %v249
        %v338 = vadd.f32 %v337, %v253
        %v339 = vadd.f32 %v338, %v257
        %v340 = vadd.f32 %v339, %v261
        %v341 = vadd.f32 %v340, %v265
        %v342 = vadd.f32 %v341, %v269
        %v343 = vsel %vm285, %v273, 0.0
        %v344 = vadd.f32 %v342, %v343
        %v345 = vrot.slane %v344, 4
        %v346 = vadd.f32 %v344, %v345
        %v347 = vrot.slane %v346, 2
        %v348 = vadd.f32 %v346, %v347
        %v349 = vrot.slane %v348, 1
        %v350 = vadd.f32 %v348, %v349
        %v351 = vmul.f32 %v293, 0.010204081
        %v352 = vmul.f32 %v312, 0.010204081
        %v353 = vmul.f32 %v331, 0.010204081
        %v354 = vmul.f32 %v350, 0.010204081
        %v355 = vld [vmem:[%s1] sm:$0xff]
        %v356 = vld [vmem:[%s1 + $0x8] sm:$0xff]
        %v357 = vld [vmem:[%s1 + $0x10] sm:$0xff]
        %v358 = vld [vmem:[%s1 + $0x18] sm:$0xff]
        %v359 = vld [vmem:[%s1 + $0x20] sm:$0xff]
        %v360 = vld [vmem:[%s1 + $0x28] sm:$0xff]
        %v361 = vld [vmem:[%s1 + $0x30] sm:$0xff]
        %v362 = vld [vmem:[%s1 + $0x38] sm:$0xff]
        %v363 = vld [vmem:[%s1 + $0x40] sm:$0xff]
        %v364 = vld [vmem:[%s1 + $0x48] sm:$0xff]
        %v365 = vld [vmem:[%s1 + $0x50] sm:$0xff]
        %v366 = vld [vmem:[%s1 + $0x58] sm:$0xff]
        %v367 = vld [vmem:[%s1 + $0x60] sm:$0xff]
        %v368 = vld [vmem:[%s1 + $0x68] sm:$0xff]
        %v369 = vld [vmem:[%s1 + $0x70] sm:$0xff]
        %v370 = vld [vmem:[%s1 + $0x78] sm:$0xff]
        %v371 = vld [vmem:[%s1 + $0x80] sm:$0xff]
        %v372 = vld [vmem:[%s1 + $0x88] sm:$0xff]
        %v373 = vld [vmem:[%s1 + $0x90] sm:$0xff]
        %v374 = vld [vmem:[%s1 + $0x98] sm:$0xff]
        %v375 = vld [vmem:[%s1 + $0xa0] sm:$0xff]
        %v376 = vld [vmem:[%s1 + $0xa8] sm:$0xff]
        %v377 = vld [vmem:[%s1 + $0xb0] sm:$0xff]
        %v378 = vld [vmem:[%s1 + $0xb8] sm:$0xff]
        %v379 = vld [vmem:[%s1 + $0xc0] sm:$0xff]
        %v380 = vld [vmem:[%s1 + $0xc8] sm:$0xff]
        %v381 = vld [vmem:[%s1 + $0xd0] sm:$0xff]
        %v382 = vld [vmem:[%s1 + $0xd8] sm:$0xff]
        %v383 = vld [vmem:[%s1 + $0xe0] sm:$0xff]
        %v384 = vld [vmem:[%s1 + $0xe8] sm:$0xff]
        %v385 = vld [vmem:[%s1 + $0xf0] sm:$0xff]
        %v386 = vld [vmem:[%s1 + $0xf8] sm:$0xff]
        %v387 = vld [vmem:[%s1 + $0x100] sm:$0xff]
        %v388 = vld [vmem:[%s1 + $0x108] sm:$0xff]
        %v389 = vld [vmem:[%s1 + $0x110] sm:$0xff]
        %v390 = vld [vmem:[%s1 + $0x118] sm:$0xff]
        %v391 = vld [vmem:[%s1 + $0x120] sm:$0xff]
        %v392 = vld [vmem:[%s1 + $0x128] sm:$0xff]
        %v393 = vld [vmem:[%s1 + $0x130] sm:$0xff]
        %v394 = vld [vmem:[%s1 + $0x138] sm:$0xff]
        %v395 = vld [vmem:[%s1 + $0x140] sm:$0xff]
        %v396 = vld [vmem:[%s1 + $0x148] sm:$0xff]
        %v397 = vld [vmem:[%s1 + $0x150] sm:$0xff]
        %v398 = vld [vmem:[%s1 + $0x158] sm:$0xff]
        %v399 = vld [vmem:[%s1 + $0x160] sm:$0xff]
        %v400 = vld [vmem:[%s1 + $0x168] sm:$0xff]
        %v401 = vld [vmem:[%s1 + $0x170] sm:$0xff]
        %v402 = vld [vmem:[%s1 + $0x178] sm:$0xff]
        %v403 = vld [vmem:[%s1 + $0x180] sm:$0xff]
        %v404 = vld [vmem:[%s1 + $0x188] sm:$0xff]
        %v405 = vld [vmem:[%s1 + $0x190] sm:$0xff]
        %v406 = vld [vmem:[%s1 + $0x198] sm:$0xff]
        %v407 = vld [vmem:[%s1 + $0x1a0] sm:$0xff]
        %v408 = vld [vmem:[%s1 + $0x1a8] sm:$0xff]
        %v409 = vld [vmem:[%s1 + $0x1b0] sm:$0xff]
        %v410 = vld [vmem:[%s1 + $0x1b8] sm:$0xff]
        %v411 = vld [vmem:[%s1 + $0x1c0] sm:$0xff]
        %v412 = vld [vmem:[%s1 + $0x1c8] sm:$0xff]
        %v413 = vld [vmem:[%s1 + $0x1d0] sm:$0xff]
        %v414 = vld [vmem:[%s1 + $0x1d8] sm:$0xff]
        %v415 = vld [vmem:[%s1 + $0x1e0] sm:$0xff]
        %v416 = vld [vmem:[%s1 + $0x1e8] sm:$0xff]
        %v417 = vld [vmem:[%s1 + $0x1f0] sm:$0xff]
        %v418 = vld [vmem:[%s1 + $0x1f8] sm:$0xff]
        %v419 = vld [vmem:[%s1 + $0x200] sm:$0xff]
        %v420 = vld [vmem:[%s1 + $0x208] sm:$0xff]
        %v421 = vld [vmem:[%s1 + $0x210] sm:$0xff]
        %v422 = vld [vmem:[%s1 + $0x218] sm:$0xff]
        %v423 = vld [vmem:[%s1 + $0x220] sm:$0xff]
        %v424 = vld [vmem:[%s1 + $0x228] sm:$0xff]
        %v425 = vld [vmem:[%s1 + $0x230] sm:$0xff]
        %v426 = vld [vmem:[%s1 + $0x238] sm:$0xff]
        %v427 = vld [vmem:[%s1 + $0x240] sm:$0xff]
        %v428 = vld [vmem:[%s1 + $0x248] sm:$0xff]
        %v429 = vld [vmem:[%s1 + $0x250] sm:$0xff]
        %v430 = vld [vmem:[%s1 + $0x258] sm:$0xff]
        %v431 = vld [vmem:[%s1 + $0x260] sm:$0xff]
        %v432 = vld [vmem:[%s1 + $0x268] sm:$0xff]
        %v433 = vld [vmem:[%s1 + $0x270] sm:$0xff]
        %v434 = vld [vmem:[%s1 + $0x278] sm:$0xff]
        %v435 = vld [vmem:[%s1 + $0x280] sm:$0xff]
        %v436 = vld [vmem:[%s1 + $0x288] sm:$0xff]
        %v437 = vld [vmem:[%s1 + $0x290] sm:$0xff]
        %v438 = vld [vmem:[%s1 + $0x298] sm:$0xff]
        %v439 = vld [vmem:[%s1 + $0x2a0] sm:$0xff]
        %v440 = vld [vmem:[%s1 + $0x2a8] sm:$0xff]
        %v441 = vld [vmem:[%s1 + $0x2b0] sm:$0xff]
        %v442 = vld [vmem:[%s1 + $0x2b8] sm:$0xff]
        %v443 = vld [vmem:[%s1 + $0x2c0] sm:$0xff]
        %v444 = vld [vmem:[%s1 + $0x2c8] sm:$0xff]
        %v445 = vld [vmem:[%s1 + $0x2d0] sm:$0xff]
        %v446 = vld [vmem:[%s1 + $0x2d8] sm:$0xff]
        %v447 = vld [vmem:[%s1 + $0x2e0] sm:$0xff]
        %v448 = vld [vmem:[%s1 + $0x2e8] sm:$0xff]
        %v449 = vld [vmem:[%s1 + $0x2f0] sm:$0xff]
        %v450 = vld [vmem:[%s1 + $0x2f8] sm:$0xff]
        %v451 = vld [vmem:[%s1 + $0x300] sm:$0xff]
        %v452 = vld [vmem:[%s1 + $0x308] sm:$0xff]
        %v453 = vld [vmem:[%s1 + $0x310] sm:$0xff]
        %v454 = vld [vmem:[%s1 + $0x318] sm:$0xff]
        %v455 = vld [vmem:[%s1 + $0x320] sm:$0xff]
        %v456 = vld [vmem:[%s1 + $0x328] sm:$0xff]
        %v457 = vld [vmem:[%s1 + $0x330] sm:$0xff]
        %v458 = vld [vmem:[%s1 + $0x338] sm:$0xff]
        %v459 = vld [vmem:[%s1 + $0x340] sm:$0xff]
        %v460 = vld [vmem:[%s1 + $0x348] sm:$0xff]
        %v461 = vld [vmem:[%s1 + $0x350] sm:$0xff]
        %v462 = vld [vmem:[%s1 + $0x358] sm:$0xff]
        %v463 = vld [vmem:[%s1 + $0x360] sm:$0xff]
        %v464 = vld [vmem:[%s1 + $0x368] sm:$0xff]
        %v465 = vld [vmem:[%s1 + $0x370] sm:$0xff]
        %v466 = vld [vmem:[%s1 + $0x378] sm:$0xff]
        %v467 = vld [vmem:[%s1 + $0x380] sm:$0xff]
        %v468 = vld [vmem:[%s1 + $0x388] sm:$0xff]
        %v469 = vld [vmem:[%s1 + $0x390] sm:$0xff]
        %v470 = vld [vmem:[%s1 + $0x398] sm:$0xff]
        %v471 = vld [vmem:[%s1 + $0x3a0] sm:$0xff]
        %v472 = vld [vmem:[%s1 + $0x3a8] sm:$0xff]
        %v473 = vld [vmem:[%s1 + $0x3b0] sm:$0xff]
        %v474 = vld [vmem:[%s1 + $0x3b8] sm:$0xff]
        %v475 = vld [vmem:[%s1 + $0x3c0] sm:$0xff]
        %v476 = vld [vmem:[%s1 + $0x3c8] sm:$0xff]
        %v477 = vld [vmem:[%s1 + $0x3d0] sm:$0xff]
        %v478 = vld [vmem:[%s1 + $0x3d8] sm:$0xff]
        %v479 = vld [vmem:[%s1 + $0x3e0] sm:$0xff]
        %v480 = vld [vmem:[%s1 + $0x3e8] sm:$0xff]
        %v481 = vld [vmem:[%s1 + $0x3f0] sm:$0xff]
        %v482 = vld [vmem:[%s1 + $0x3f8] sm:$0xff]
        %v483 = vld [vmem:[%s1 + $0x400] sm:$0xff]
        %v484 = vld [vmem:[%s1 + $0x408] sm:$0xff]
        %v485 = vld [vmem:[%s1 + $0x410] sm:$0xff]
        %v486 = vld [vmem:[%s1 + $0x418] sm:$0xff]
        %v487 = vld [vmem:[%s1 + $0x420] sm:$0xff]
        %v488 = vld [vmem:[%s1 + $0x428] sm:$0xff]
        %v489 = vld [vmem:[%s1 + $0x430] sm:$0xff]
        %v490 = vld [vmem:[%s1 + $0x438] sm:$0xff]
        %v491 = vld [vmem:[%s1 + $0x440] sm:$0xff]
        %v492 = vld [vmem:[%s1 + $0x448] sm:$0xff]
        %v493 = vld [vmem:[%s1 + $0x450] sm:$0xff]
        %v494 = vld [vmem:[%s1 + $0x458] sm:$0xff]
        %v495 = vld [vmem:[%s1 + $0x460] sm:$0xff]
        %v496 = vld [vmem:[%s1 + $0x468] sm:$0xff]
        %v497 = vld [vmem:[%s1 + $0x470] sm:$0xff]
        %v498 = vld [vmem:[%s1 + $0x478] sm:$0xff]
        %v499 = vld [vmem:[%s1 + $0x480] sm:$0xff]
        %v500 = vld [vmem:[%s1 + $0x488] sm:$0xff]
        %v501 = vld [vmem:[%s1 + $0x490] sm:$0xff]
        %v502 = vld [vmem:[%s1 + $0x498] sm:$0xff]
        %v503 = vld [vmem:[%s1 + $0x4a0] sm:$0xff]
        %v504 = vld [vmem:[%s1 + $0x4a8] sm:$0xff]
        %v505 = vld [vmem:[%s1 + $0x4b0] sm:$0xff]
        %v506 = vld [vmem:[%s1 + $0x4b8] sm:$0xff]
        %v507 = vld [vmem:[%s1 + $0x4c0] sm:$0xff]
        %v508 = vld [vmem:[%s1 + $0x4c8] sm:$0xff]
        %v509 = vld [vmem:[%s1 + $0x4d0] sm:$0xff]
        %v510 = vld [vmem:[%s1 + $0x4d8] sm:$0xff]
        %v511 = vld [vmem:[%s1 + $0x4e0] sm:$0xff]
        %v512 = vld [vmem:[%s1 + $0x4e8] sm:$0xff]
        %v513 = vld [vmem:[%s1 + $0x4f0] sm:$0xff]
        %v514 = vld [vmem:[%s1 + $0x4f8] sm:$0xff]
        %v515 = vld [vmem:[%s1 + $0x500] sm:$0xff]
        %v516 = vld [vmem:[%s1 + $0x508] sm:$0xff]
        %v517 = vld [vmem:[%s1 + $0x510] sm:$0xff]
        %v518 = vld [vmem:[%s1 + $0x518] sm:$0xff]
        %v519 = vld [vmem:[%s1 + $0x520] sm:$0xff]
        %v520 = vld [vmem:[%s1 + $0x528] sm:$0xff]
        %v521 = vld [vmem:[%s1 + $0x530] sm:$0xff]
        %v522 = vld [vmem:[%s1 + $0x538] sm:$0xff]
        %v523 = vld [vmem:[%s1 + $0x540] sm:$0xff]
        %v524 = vld [vmem:[%s1 + $0x548] sm:$0xff]
        %v525 = vld [vmem:[%s1 + $0x550] sm:$0xff]
        %v526 = vld [vmem:[%s1 + $0x558] sm:$0xff]
        %v527 = vld [vmem:[%s1 + $0x560] sm:$0xff]
        %v528 = vld [vmem:[%s1 + $0x568] sm:$0xff]
        %v529 = vld [vmem:[%s1 + $0x570] sm:$0xff]
        %v530 = vld [vmem:[%s1 + $0x578] sm:$0xff]
        %v531 = vld [vmem:[%s1 + $0x580] sm:$0xff]
        %v532 = vld [vmem:[%s1 + $0x588] sm:$0xff]
        %v533 = vld [vmem:[%s1 + $0x590] sm:$0xff]
        %v534 = vld [vmem:[%s1 + $0x598] sm:$0xff]
        %v535 = vld [vmem:[%s1 + $0x5a0] sm:$0xff]
        %v536 = vld [vmem:[%s1 + $0x5a8] sm:$0xff]
        %v537 = vld [vmem:[%s1 + $0x5b0] sm:$0xff]
        %v538 = vld [vmem:[%s1 + $0x5b8] sm:$0xff]
        %v539 = vld [vmem:[%s1 + $0x5c0] sm:$0xff]
        %v540 = vld [vmem:[%s1 + $0x5c8] sm:$0xff]
        %v541 = vld [vmem:[%s1 + $0x5d0] sm:$0xff]
        %v542 = vld [vmem:[%s1 + $0x5d8] sm:$0xff]
        %v543 = vld [vmem:[%s1 + $0x5e0] sm:$0xff]
        %v544 = vld [vmem:[%s1 + $0x5e8] sm:$0xff]
        %v545 = vld [vmem:[%s1 + $0x5f0] sm:$0xff]
        %v546 = vld [vmem:[%s1 + $0x5f8] sm:$0xff]
        %v547 = vld [vmem:[%s1 + $0x600] sm:$0xff]
        %v548 = vld [vmem:[%s1 + $0x608] sm:$0xff]
        %v549 = vld [vmem:[%s1 + $0x610] sm:$0xff]
        %v550 = vld [vmem:[%s1 + $0x618] sm:$0xff]
        %v551 = vld [vmem:[%s1 + $0x620] sm:$0xff]
        %v552 = vld [vmem:[%s1 + $0x628] sm:$0xff]
        %v553 = vld [vmem:[%s1 + $0x630] sm:$0xff]
        %v554 = vld [vmem:[%s1 + $0x638] sm:$0xff]
        %v555 = vld [vmem:[%s1 + $0x640] sm:$0xff]
        %v556 = vld [vmem:[%s1 + $0x648] sm:$0xff]
        %v557 = vld [vmem:[%s1 + $0x650] sm:$0xff]
        %v558 = vld [vmem:[%s1 + $0x658] sm:$0xff]
        %v559 = vld [vmem:[%s1 + $0x660] sm:$0xff]
        %v560 = vld [vmem:[%s1 + $0x668] sm:$0xff]
        %v561 = vld [vmem:[%s1 + $0x670] sm:$0xff]
        %v562 = vld [vmem:[%s1 + $0x678] sm:$0xff]
        %v563 = vld [vmem:[%s1 + $0x680] sm:$0xff]
        %v564 = vld [vmem:[%s1 + $0x688] sm:$0xff]
        %v565 = vld [vmem:[%s1 + $0x690] sm:$0xff]
        %v566 = vld [vmem:[%s1 + $0x698] sm:$0xff]
        %v567 = vld [vmem:[%s1 + $0x6a0] sm:$0xff]
        %v568 = vld [vmem:[%s1 + $0x6a8] sm:$0xff]
        %v569 = vld [vmem:[%s1 + $0x6b0] sm:$0xff]
        %v570 = vld [vmem:[%s1 + $0x6b8] sm:$0xff]
        %v571 = vld [vmem:[%s1 + $0x6c0] sm:$0xff]
        %v572 = vld [vmem:[%s1 + $0x6c8] sm:$0xff]
        %v573 = vld [vmem:[%s1 + $0x6d0] sm:$0xff]
        %v574 = vld [vmem:[%s1 + $0x6d8] sm:$0xff]
        %v575 = vld [vmem:[%s1 + $0x6e0] sm:$0xff]
        %v576 = vld [vmem:[%s1 + $0x6e8] sm:$0xff]
        %v577 = vld [vmem:[%s1 + $0x6f0] sm:$0xff]
        %v578 = vld [vmem:[%s1 + $0x6f8] sm:$0xff]
        %v579 = vld [vmem:[%s1 + $0x700] sm:$0xff]
        %v580 = vld [vmem:[%s1 + $0x708] sm:$0xff]
        %v581 = vld [vmem:[%s1 + $0x710] sm:$0xff]
        %v582 = vld [vmem:[%s1 + $0x718] sm:$0xff]
        %v583 = vld [vmem:[%s1 + $0x720] sm:$0xff]
        %v584 = vld [vmem:[%s1 + $0x728] sm:$0xff]
        %v585 = vld [vmem:[%s1 + $0x730] sm:$0xff]
        %v586 = vld [vmem:[%s1 + $0x738] sm:$0xff]
        %v587 = vld [vmem:[%s1 + $0x740] sm:$0xff]
        %v588 = vld [vmem:[%s1 + $0x748] sm:$0xff]
        %v589 = vld [vmem:[%s1 + $0x750] sm:$0xff]
        %v590 = vld [vmem:[%s1 + $0x758] sm:$0xff]
        %v591 = vld [vmem:[%s1 + $0x760] sm:$0xff]
        %v592 = vld [vmem:[%s1 + $0x768] sm:$0xff]
        %v593 = vld [vmem:[%s1 + $0x770] sm:$0xff]
        %v594 = vld [vmem:[%s1 + $0x778] sm:$0xff]
        %v595 = vld [vmem:[%s1 + $0x780] sm:$0xff]
        %v596 = vld [vmem:[%s1 + $0x788] sm:$0xff]
        %v597 = vld [vmem:[%s1 + $0x790] sm:$0xff]
        %v598 = vld [vmem:[%s1 + $0x798] sm:$0xff]
        %v599 = vld [vmem:[%s1 + $0x7a0] sm:$0xff]
        %v600 = vld [vmem:[%s1 + $0x7a8] sm:$0xff]
        %v601 = vld [vmem:[%s1 + $0x7b0] sm:$0xff]
        %v602 = vld [vmem:[%s1 + $0x7b8] sm:$0xff]
        %v603 = vld [vmem:[%s1 + $0x7c0] sm:$0xff]
        %v604 = vld [vmem:[%s1 + $0x7c8] sm:$0xff]
        %v605 = vld [vmem:[%s1 + $0x7d0] sm:$0xff]
        %v606 = vld [vmem:[%s1 + $0x7d8] sm:$0xff]
        %v607 = vld [vmem:[%s1 + $0x7e0] sm:$0xff]
        %v608 = vld [vmem:[%s1 + $0x7e8] sm:$0xff]
        %v609 = vld [vmem:[%s1 + $0x7f0] sm:$0xff]
        %v610 = vld [vmem:[%s1 + $0x7f8] sm:$0xff]
        %v611 = vld [vmem:[%s2] sm:$0xf]
        %v613 = vperm.slane %v611, 0
        %v614 = vperm.slane %v611, 1
        %v615 = vperm.slane %v611, 2
        %v616 = vperm.slane %v611, 3
        %621 = vmatpush.msra.mxu0 %v415
        %622 = vmatpush.msra.mxu0 %v411
        %623 = vmatpush.msra.mxu0 %v407
        %624 = vmatpush.msra.mxu0 %v403
        %625 = vmatpush.msra.mxu0 %v399
        %626 = vmatpush.msra.mxu0 %v395
        %627 = vmatpush.msra.mxu0 %v391
        %628 = vmatpush.msra.mxu0 %v387
        %629 = vmatpush.msra.mxu0 %v383
        %630 = vmatpush.msra.mxu0 %v379
        %631 = vmatpush.msra.mxu0 %v375
        %632 = vmatpush.msra.mxu0 %v371
        %633 = vmatpush.msra.mxu0 %v367
        %634 = vmatpush.msra.mxu0 %v363
        %635 = vmatpush.msra.mxu0 %v359
        %636 = vmatpush.msra.mxu0 %v355
        %637 = vmatmul.f32.gmra.mxu0 %v351
        %v638 = vpop.f32.mrf.mxu0
        %v639 = vadd.f32 %v613, %v638
        %640 = vdwg.mxu0
        %641 = vmatpush.msra.mxu0 %v479
        %642 = vmatpush.msra.mxu0 %v475
        %643 = vmatpush.msra.mxu0 %v471
        %644 = vmatpush.msra.mxu0 %v467
        %645 = vmatpush.msra.mxu0 %v463
        %646 = vmatpush.msra.mxu0 %v459
        %647 = vmatpush.msra.mxu0 %v455
        %648 = vmatpush.msra.mxu0 %v451
        %649 = vmatpush.msra.mxu0 %v447
        %650 = vmatpush.msra.mxu0 %v443
        %651 = vmatpush.msra.mxu0 %v439
        %652 = vmatpush.msra.mxu0 %v435
        %653 = vmatpush.msra.mxu0 %v431
        %654 = vmatpush.msra.mxu0 %v427
        %655 = vmatpush.msra.mxu0 %v423
        %656 = vmatpush.msra.mxu0 %v419
        %657 = vmatmul.f32.gmra.mxu0 %v352
        %v658 = vpop.f32.mrf.mxu0
        %v659 = vadd.f32 %v639, %v658
        %660 = vdwg.mxu0
        %661 = vmatpush.msra.mxu0 %v543
        %662 = vmatpush.msra.mxu0 %v539
        %663 = vmatpush.msra.mxu0 %v535
        %664 = vmatpush.msra.mxu0 %v531
        %665 = vmatpush.msra.mxu0 %v527
        %666 = vmatpush.msra.mxu0 %v523
        %667 = vmatpush.msra.mxu0 %v519
        %668 = vmatpush.msra.mxu0 %v515
        %669 = vmatpush.msra.mxu0 %v511
        %670 = vmatpush.msra.mxu0 %v507
        %671 = vmatpush.msra.mxu0 %v503
        %672 = vmatpush.msra.mxu0 %v499
        %673 = vmatpush.msra.mxu0 %v495
        %674 = vmatpush.msra.mxu0 %v491
        %675 = vmatpush.msra.mxu0 %v487
        %676 = vmatpush.msra.mxu0 %v483
        %677 = vmatmul.f32.gmra.mxu0 %v353
        %v678 = vpop.f32.mrf.mxu0
        %v679 = vadd.f32 %v659, %v678
        %680 = vdwg.mxu0
        %681 = vmatpush.msra.mxu0 %v607
        %682 = vmatpush.msra.mxu0 %v603
        %683 = vmatpush.msra.mxu0 %v599
        %684 = vmatpush.msra.mxu0 %v595
        %685 = vmatpush.msra.mxu0 %v591
        %686 = vmatpush.msra.mxu0 %v587
        %687 = vmatpush.msra.mxu0 %v583
        %688 = vmatpush.msra.mxu0 %v579
        %689 = vmatpush.msra.mxu0 %v575
        %690 = vmatpush.msra.mxu0 %v571
        %691 = vmatpush.msra.mxu0 %v567
        %692 = vmatpush.msra.mxu0 %v563
        %693 = vmatpush.msra.mxu0 %v559
        %694 = vmatpush.msra.mxu0 %v555
        %695 = vmatpush.msra.mxu0 %v551
        %696 = vmatpush.msra.mxu0 %v547
        %697 = vmatmul.f32.gmra.mxu0 %v354
        %v698 = vpop.f32.mrf.mxu0
        %v699 = vadd.f32 %v679, %v698
        %700 = vdwg.mxu0
        %701 = vmatpush.msra.mxu0 %v416
        %702 = vmatpush.msra.mxu0 %v412
        %703 = vmatpush.msra.mxu0 %v408
        %704 = vmatpush.msra.mxu0 %v404
        %705 = vmatpush.msra.mxu0 %v400
        %706 = vmatpush.msra.mxu0 %v396
        %707 = vmatpush.msra.mxu0 %v392
        %708 = vmatpush.msra.mxu0 %v388
        %709 = vmatpush.msra.mxu0 %v384
        %710 = vmatpush.msra.mxu0 %v380
        %711 = vmatpush.msra.mxu0 %v376
        %712 = vmatpush.msra.mxu0 %v372
        %713 = vmatpush.msra.mxu0 %v368
        %714 = vmatpush.msra.mxu0 %v364
        %715 = vmatpush.msra.mxu0 %v360
        %716 = vmatpush.msra.mxu0 %v356
        %717 = vmatmul.f32.gmra.mxu0 %v351
        %v718 = vpop.f32.mrf.mxu0
        %v719 = vadd.f32 %v614, %v718
        %720 = vdwg.mxu0
        %721 = vmatpush.msra.mxu0 %v480
        %722 = vmatpush.msra.mxu0 %v476
        %723 = vmatpush.msra.mxu0 %v472
        %724 = vmatpush.msra.mxu0 %v468
        %725 = vmatpush.msra.mxu0 %v464
        %726 = vmatpush.msra.mxu0 %v460
        %727 = vmatpush.msra.mxu0 %v456
        %728 = vmatpush.msra.mxu0 %v452
        %729 = vmatpush.msra.mxu0 %v448
        %730 = vmatpush.msra.mxu0 %v444
        %731 = vmatpush.msra.mxu0 %v440
        %732 = vmatpush.msra.mxu0 %v436
        %733 = vmatpush.msra.mxu0 %v432
        %734 = vmatpush.msra.mxu0 %v428
        %735 = vmatpush.msra.mxu0 %v424
        %736 = vmatpush.msra.mxu0 %v420
        %737 = vmatmul.f32.gmra.mxu0 %v352
        %v738 = vpop.f32.mrf.mxu0
        %v739 = vadd.f32 %v719, %v738
        %740 = vdwg.mxu0
        %741 = vmatpush.msra.mxu0 %v544
        %742 = vmatpush.msra.mxu0 %v540
        %743 = vmatpush.msra.mxu0 %v536
        %744 = vmatpush.msra.mxu0 %v532
        %745 = vmatpush.msra.mxu0 %v528
        %746 = vmatpush.msra.mxu0 %v524
        %747 = vmatpush.msra.mxu0 %v520
        %748 = vmatpush.msra.mxu0 %v516
        %749 = vmatpush.msra.mxu0 %v512
        %750 = vmatpush.msra.mxu0 %v508
        %751 = vmatpush.msra.mxu0 %v504
        %752 = vmatpush.msra.mxu0 %v500
        %753 = vmatpush.msra.mxu0 %v496
        %754 = vmatpush.msra.mxu0 %v492
        %755 = vmatpush.msra.mxu0 %v488
        %756 = vmatpush.msra.mxu0 %v484
        %757 = vmatmul.f32.gmra.mxu0 %v353
        %v758 = vpop.f32.mrf.mxu0
        %v759 = vadd.f32 %v739, %v758
        %760 = vdwg.mxu0
        %761 = vmatpush.msra.mxu0 %v608
        %762 = vmatpush.msra.mxu0 %v604
        %763 = vmatpush.msra.mxu0 %v600
        %764 = vmatpush.msra.mxu0 %v596
        %765 = vmatpush.msra.mxu0 %v592
        %766 = vmatpush.msra.mxu0 %v588
        %767 = vmatpush.msra.mxu0 %v584
        %768 = vmatpush.msra.mxu0 %v580
        %769 = vmatpush.msra.mxu0 %v576
        %770 = vmatpush.msra.mxu0 %v572
        %771 = vmatpush.msra.mxu0 %v568
        %772 = vmatpush.msra.mxu0 %v564
        %773 = vmatpush.msra.mxu0 %v560
        %774 = vmatpush.msra.mxu0 %v556
        %775 = vmatpush.msra.mxu0 %v552
        %776 = vmatpush.msra.mxu0 %v548
        %777 = vmatmul.f32.gmra.mxu0 %v354
        %v778 = vpop.f32.mrf.mxu0
        %v779 = vadd.f32 %v759, %v778
        %780 = vdwg.mxu0
        %781 = vmatpush.msra.mxu0 %v417
        %782 = vmatpush.msra.mxu0 %v413
        %783 = vmatpush.msra.mxu0 %v409
        %784 = vmatpush.msra.mxu0 %v405
        %785 = vmatpush.msra.mxu0 %v401
        %786 = vmatpush.msra.mxu0 %v397
        %787 = vmatpush.msra.mxu0 %v393
        %788 = vmatpush.msra.mxu0 %v389
        %789 = vmatpush.msra.mxu0 %v385
        %790 = vmatpush.msra.mxu0 %v381
        %791 = vmatpush.msra.mxu0 %v377
        %792 = vmatpush.msra.mxu0 %v373
        %793 = vmatpush.msra.mxu0 %v369
        %794 = vmatpush.msra.mxu0 %v365
        %795 = vmatpush.msra.mxu0 %v361
        %796 = vmatpush.msra.mxu0 %v357
        %797 = vmatmul.f32.gmra.mxu0 %v351
        %v798 = vpop.f32.mrf.mxu0
        %v799 = vadd.f32 %v615, %v798
        %800 = vdwg.mxu0
        %801 = vmatpush.msra.mxu0 %v481
        %802 = vmatpush.msra.mxu0 %v477
        %803 = vmatpush.msra.mxu0 %v473
        %804 = vmatpush.msra.mxu0 %v469
        %805 = vmatpush.msra.mxu0 %v465
        %806 = vmatpush.msra.mxu0 %v461
        %807 = vmatpush.msra.mxu0 %v457
        %808 = vmatpush.msra.mxu0 %v453
        %809 = vmatpush.msra.mxu0 %v449
        %810 = vmatpush.msra.mxu0 %v445
        %811 = vmatpush.msra.mxu0 %v441
        %812 = vmatpush.msra.mxu0 %v437
        %813 = vmatpush.msra.mxu0 %v433
        %814 = vmatpush.msra.mxu0 %v429
        %815 = vmatpush.msra.mxu0 %v425
        %816 = vmatpush.msra.mxu0 %v421
        %817 = vmatmul.f32.gmra.mxu0 %v352
        %v818 = vpop.f32.mrf.mxu0
        %v819 = vadd.f32 %v799, %v818
        %820 = vdwg.mxu0
        %821 = vmatpush.msra.mxu0 %v545
        %822 = vmatpush.msra.mxu0 %v541
        %823 = vmatpush.msra.mxu0 %v537
        %824 = vmatpush.msra.mxu0 %v533
        %825 = vmatpush.msra.mxu0 %v529
        %826 = vmatpush.msra.mxu0 %v525
        %827 = vmatpush.msra.mxu0 %v521
        %828 = vmatpush.msra.mxu0 %v517
        %829 = vmatpush.msra.mxu0 %v513
        %830 = vmatpush.msra.mxu0 %v509
        %831 = vmatpush.msra.mxu0 %v505
        %832 = vmatpush.msra.mxu0 %v501
        %833 = vmatpush.msra.mxu0 %v497
        %834 = vmatpush.msra.mxu0 %v493
        %835 = vmatpush.msra.mxu0 %v489
        %836 = vmatpush.msra.mxu0 %v485
        %837 = vmatmul.f32.gmra.mxu0 %v353
        %v838 = vpop.f32.mrf.mxu0
        %v839 = vadd.f32 %v819, %v838
        %840 = vdwg.mxu0
        %841 = vmatpush.msra.mxu0 %v609
        %842 = vmatpush.msra.mxu0 %v605
        %843 = vmatpush.msra.mxu0 %v601
        %844 = vmatpush.msra.mxu0 %v597
        %845 = vmatpush.msra.mxu0 %v593
        %846 = vmatpush.msra.mxu0 %v589
        %847 = vmatpush.msra.mxu0 %v585
        %848 = vmatpush.msra.mxu0 %v581
        %849 = vmatpush.msra.mxu0 %v577
        %850 = vmatpush.msra.mxu0 %v573
        %851 = vmatpush.msra.mxu0 %v569
        %852 = vmatpush.msra.mxu0 %v565
        %853 = vmatpush.msra.mxu0 %v561
        %854 = vmatpush.msra.mxu0 %v557
        %855 = vmatpush.msra.mxu0 %v553
        %856 = vmatpush.msra.mxu0 %v549
        %857 = vmatmul.f32.gmra.mxu0 %v354
        %v858 = vpop.f32.mrf.mxu0
        %v859 = vadd.f32 %v839, %v858
        %860 = vdwg.mxu0
        %861 = vmatpush.msra.mxu0 %v418
        %862 = vmatpush.msra.mxu0 %v414
        %863 = vmatpush.msra.mxu0 %v410
        %864 = vmatpush.msra.mxu0 %v406
        %865 = vmatpush.msra.mxu0 %v402
        %866 = vmatpush.msra.mxu0 %v398
        %867 = vmatpush.msra.mxu0 %v394
        %868 = vmatpush.msra.mxu0 %v390
        %869 = vmatpush.msra.mxu0 %v386
        %870 = vmatpush.msra.mxu0 %v382
        %871 = vmatpush.msra.mxu0 %v378
        %872 = vmatpush.msra.mxu0 %v374
        %873 = vmatpush.msra.mxu0 %v370
        %874 = vmatpush.msra.mxu0 %v366
        %875 = vmatpush.msra.mxu0 %v362
        %876 = vmatpush.msra.mxu0 %v358
        %877 = vmatmul.f32.gmra.mxu0 %v351
        %v878 = vpop.f32.mrf.mxu0
        %v879 = vadd.f32 %v616, %v878
        %880 = vdwg.mxu0
        %881 = vmatpush.msra.mxu0 %v482
        %882 = vmatpush.msra.mxu0 %v478
        %883 = vmatpush.msra.mxu0 %v474
        %884 = vmatpush.msra.mxu0 %v470
        %885 = vmatpush.msra.mxu0 %v466
        %886 = vmatpush.msra.mxu0 %v462
        %887 = vmatpush.msra.mxu0 %v458
        %888 = vmatpush.msra.mxu0 %v454
        %889 = vmatpush.msra.mxu0 %v450
        %890 = vmatpush.msra.mxu0 %v446
        %891 = vmatpush.msra.mxu0 %v442
        %892 = vmatpush.msra.mxu0 %v438
        %893 = vmatpush.msra.mxu0 %v434
        %894 = vmatpush.msra.mxu0 %v430
        %895 = vmatpush.msra.mxu0 %v426
        %896 = vmatpush.msra.mxu0 %v422
        %897 = vmatmul.f32.gmra.mxu0 %v352
        %v898 = vpop.f32.mrf.mxu0
        %v899 = vadd.f32 %v879, %v898
        %900 = vdwg.mxu0
        %901 = vmatpush.msra.mxu0 %v546
        %902 = vmatpush.msra.mxu0 %v542
        %903 = vmatpush.msra.mxu0 %v538
        %904 = vmatpush.msra.mxu0 %v534
        %905 = vmatpush.msra.mxu0 %v530
        %906 = vmatpush.msra.mxu0 %v526
        %907 = vmatpush.msra.mxu0 %v522
        %908 = vmatpush.msra.mxu0 %v518
        %909 = vmatpush.msra.mxu0 %v514
        %910 = vmatpush.msra.mxu0 %v510
        %911 = vmatpush.msra.mxu0 %v506
        %912 = vmatpush.msra.mxu0 %v502
        %913 = vmatpush.msra.mxu0 %v498
        %914 = vmatpush.msra.mxu0 %v494
        %915 = vmatpush.msra.mxu0 %v490
        %916 = vmatpush.msra.mxu0 %v486
        %917 = vmatmul.f32.gmra.mxu0 %v353
        %v918 = vpop.f32.mrf.mxu0
        %v919 = vadd.f32 %v899, %v918
        %920 = vdwg.mxu0
        %921 = vmatpush.msra.mxu0 %v610
        %922 = vmatpush.msra.mxu0 %v606
        %923 = vmatpush.msra.mxu0 %v602
        %924 = vmatpush.msra.mxu0 %v598
        %925 = vmatpush.msra.mxu0 %v594
        %926 = vmatpush.msra.mxu0 %v590
        %927 = vmatpush.msra.mxu0 %v586
        %928 = vmatpush.msra.mxu0 %v582
        %929 = vmatpush.msra.mxu0 %v578
        %930 = vmatpush.msra.mxu0 %v574
        %931 = vmatpush.msra.mxu0 %v570
        %932 = vmatpush.msra.mxu0 %v566
        %933 = vmatpush.msra.mxu0 %v562
        %934 = vmatpush.msra.mxu0 %v558
        %935 = vmatpush.msra.mxu0 %v554
        %936 = vmatpush.msra.mxu0 %v550
        %937 = vmatmul.f32.gmra.mxu0 %v354
        %v938 = vpop.f32.mrf.mxu0
        %v939 = vadd.f32 %v919, %v938
        %940 = vdwg.mxu0
        %v941 = vmax.f32 %v699, 0.0
        %v942 = vmax.f32 %v779, 0.0
        %v943 = vmax.f32 %v859, 0.0
        %v944 = vmax.f32 %v939, 0.0
        %v945 = vld [vmem:[%s3] sm:$0xff]
        %v946 = vld [vmem:[%s3 + $0x8] sm:$0xff]
        %v947 = vld [vmem:[%s3 + $0x10] sm:$0xff]
        %v948 = vld [vmem:[%s3 + $0x18] sm:$0xff]
        %v949 = vld [vmem:[%s3 + $0x20] sm:$0xff]
        %v950 = vld [vmem:[%s3 + $0x28] sm:$0xff]
        %v951 = vld [vmem:[%s3 + $0x30] sm:$0xff]
        %v952 = vld [vmem:[%s3 + $0x38] sm:$0xff]
        %v953 = vld [vmem:[%s3 + $0x40] sm:$0xff]
        %v954 = vld [vmem:[%s3 + $0x48] sm:$0xff]
        %v955 = vld [vmem:[%s3 + $0x50] sm:$0xff]
        %v956 = vld [vmem:[%s3 + $0x58] sm:$0xff]
        %v957 = vld [vmem:[%s3 + $0x60] sm:$0xff]
        %v958 = vld [vmem:[%s3 + $0x68] sm:$0xff]
        %v959 = vld [vmem:[%s3 + $0x70] sm:$0xff]
        %v960 = vld [vmem:[%s3 + $0x78] sm:$0xff]
        %v961 = vld [vmem:[%s3 + $0x80] sm:$0xff]
        %v962 = vld [vmem:[%s3 + $0x88] sm:$0xff]
        %v963 = vld [vmem:[%s3 + $0x90] sm:$0xff]
        %v964 = vld [vmem:[%s3 + $0x98] sm:$0xff]
        %v965 = vld [vmem:[%s3 + $0xa0] sm:$0xff]
        %v966 = vld [vmem:[%s3 + $0xa8] sm:$0xff]
        %v967 = vld [vmem:[%s3 + $0xb0] sm:$0xff]
        %v968 = vld [vmem:[%s3 + $0xb8] sm:$0xff]
        %v969 = vld [vmem:[%s3 + $0xc0] sm:$0xff]
        %v970 = vld [vmem:[%s3 + $0xc8] sm:$0xff]
        %v971 = vld [vmem:[%s3 + $0xd0] sm:$0xff]
        %v972 = vld [vmem:[%s3 + $0xd8] sm:$0xff]
        %v973 = vld [vmem:[%s3 + $0xe0] sm:$0xff]
        %v974 = vld [vmem:[%s3 + $0xe8] sm:$0xff]
        %v975 = vld [vmem:[%s3 + $0xf0] sm:$0xff]
        %v976 = vld [vmem:[%s3 + $0xf8] sm:$0xff]
        %v977 = vld [vmem:[%s3 + $0x100] sm:$0xff]
        %v978 = vld [vmem:[%s3 + $0x108] sm:$0xff]
        %v979 = vld [vmem:[%s3 + $0x110] sm:$0xff]
        %v980 = vld [vmem:[%s3 + $0x118] sm:$0xff]
        %v981 = vld [vmem:[%s3 + $0x120] sm:$0xff]
        %v982 = vld [vmem:[%s3 + $0x128] sm:$0xff]
        %v983 = vld [vmem:[%s3 + $0x130] sm:$0xff]
        %v984 = vld [vmem:[%s3 + $0x138] sm:$0xff]
        %v985 = vld [vmem:[%s3 + $0x140] sm:$0xff]
        %v986 = vld [vmem:[%s3 + $0x148] sm:$0xff]
        %v987 = vld [vmem:[%s3 + $0x150] sm:$0xff]
        %v988 = vld [vmem:[%s3 + $0x158] sm:$0xff]
        %v989 = vld [vmem:[%s3 + $0x160] sm:$0xff]
        %v990 = vld [vmem:[%s3 + $0x168] sm:$0xff]
        %v991 = vld [vmem:[%s3 + $0x170] sm:$0xff]
        %v992 = vld [vmem:[%s3 + $0x178] sm:$0xff]
        %v993 = vld [vmem:[%s3 + $0x180] sm:$0xff]
        %v994 = vld [vmem:[%s3 + $0x188] sm:$0xff]
        %v995 = vld [vmem:[%s3 + $0x190] sm:$0xff]
        %v996 = vld [vmem:[%s3 + $0x198] sm:$0xff]
        %v997 = vld [vmem:[%s3 + $0x1a0] sm:$0xff]
        %v998 = vld [vmem:[%s3 + $0x1a8] sm:$0xff]
        %v999 = vld [vmem:[%s3 + $0x1b0] sm:$0xff]
        %v1000 = vld [vmem:[%s3 + $0x1b8] sm:$0xff]
        %v1001 = vld [vmem:[%s3 + $0x1c0] sm:$0xff]
        %v1002 = vld [vmem:[%s3 + $0x1c8] sm:$0xff]
        %v1003 = vld [vmem:[%s3 + $0x1d0] sm:$0xff]
        %v1004 = vld [vmem:[%s3 + $0x1d8] sm:$0xff]
        %v1005 = vld [vmem:[%s3 + $0x1e0] sm:$0xff]
        %v1006 = vld [vmem:[%s3 + $0x1e8] sm:$0xff]
        %v1007 = vld [vmem:[%s3 + $0x1f0] sm:$0xff]
        %v1008 = vld [vmem:[%s3 + $0x1f8] sm:$0xff]
        %v1009 = vld [vmem:[%s4] sm:$0x1]
        %1010 = vmatpush.msra.mxu0 %v960
        %1011 = vmatpush.msra.mxu0 %v959
        %1012 = vmatpush.msra.mxu0 %v958
        %1013 = vmatpush.msra.mxu0 %v957
        %1014 = vmatpush.msra.mxu0 %v956
        %1015 = vmatpush.msra.mxu0 %v955
        %1016 = vmatpush.msra.mxu0 %v954
        %1017 = vmatpush.msra.mxu0 %v953
        %1018 = vmatpush.msra.mxu0 %v952
        %1019 = vmatpush.msra.mxu0 %v951
        %1020 = vmatpush.msra.mxu0 %v950
        %1021 = vmatpush.msra.mxu0 %v949
        %1022 = vmatpush.msra.mxu0 %v948
        %1023 = vmatpush.msra.mxu0 %v947
        %1024 = vmatpush.msra.mxu0 %v946
        %1025 = vmatpush.msra.mxu0 %v945
        %1026 = vmatmul.f32.gmra.mxu0 %v941
        %v1027 = vpop.f32.mrf.mxu0
        %v1028 = vadd.f32 %v1009, %v1027
        %1029 = vdwg.mxu0
        %1030 = vmatpush.msra.mxu0 %v976
        %1031 = vmatpush.msra.mxu0 %v975
        %1032 = vmatpush.msra.mxu0 %v974
        %1033 = vmatpush.msra.mxu0 %v973
        %1034 = vmatpush.msra.mxu0 %v972
        %1035 = vmatpush.msra.mxu0 %v971
        %1036 = vmatpush.msra.mxu0 %v970
        %1037 = vmatpush.msra.mxu0 %v969
        %1038 = vmatpush.msra.mxu0 %v968
        %1039 = vmatpush.msra.mxu0 %v967
        %1040 = vmatpush.msra.mxu0 %v966
        %1041 = vmatpush.msra.mxu0 %v965
        %1042 = vmatpush.msra.mxu0 %v964
        %1043 = vmatpush.msra.mxu0 %v963
        %1044 = vmatpush.msra.mxu0 %v962
        %1045 = vmatpush.msra.mxu0 %v961
        %1046 = vmatmul.f32.gmra.mxu0 %v942
        %v1047 = vpop.f32.mrf.mxu0
        %v1048 = vadd.f32 %v1028, %v1047
        %1049 = vdwg.mxu0
        %1050 = vmatpush.msra.mxu0 %v992
        %1051 = vmatpush.msra.mxu0 %v991
        %1052 = vmatpush.msra.mxu0 %v990
        %1053 = vmatpush.msra.mxu0 %v989
        %1054 = vmatpush.msra.mxu0 %v988
        %1055 = vmatpush.msra.mxu0 %v987
        %1056 = vmatpush.msra.mxu0 %v986
        %1057 = vmatpush.msra.mxu0 %v985
        %1058 = vmatpush.msra.mxu0 %v984
        %1059 = vmatpush.msra.mxu0 %v983
        %1060 = vmatpush.msra.mxu0 %v982
        %1061 = vmatpush.msra.mxu0 %v981
        %1062 = vmatpush.msra.mxu0 %v980
        %1063 = vmatpush.msra.mxu0 %v979
        %1064 = vmatpush.msra.mxu0 %v978
        %1065 = vmatpush.msra.mxu0 %v977
        %1066 = vmatmul.f32.gmra.mxu0 %v943
        %v1067 = vpop.f32.mrf.mxu0
        %v1068 = vadd.f32 %v1048, %v1067
        %1069 = vdwg.mxu0
        %1070 = vmatpush.msra.mxu0 %v1008
        %1071 = vmatpush.msra.mxu0 %v1007
        %1072 = vmatpush.msra.mxu0 %v1006
        %1073 = vmatpush.msra.mxu0 %v1005
        %1074 = vmatpush.msra.mxu0 %v1004
        %1075 = vmatpush.msra.mxu0 %v1003
        %1076 = vmatpush.msra.mxu0 %v1002
        %1077 = vmatpush.msra.mxu0 %v1001
        %1078 = vmatpush.msra.mxu0 %v1000
        %1079 = vmatpush.msra.mxu0 %v999
        %1080 = vmatpush.msra.mxu0 %v998
        %1081 = vmatpush.msra.mxu0 %v997
        %1082 = vmatpush.msra.mxu0 %v996
        %1083 = vmatpush.msra.mxu0 %v995
        %1084 = vmatpush.msra.mxu0 %v994
        %1085 = vmatpush.msra.mxu0 %v993
        %1086 = vmatmul.f32.gmra.mxu0 %v944
        %v1087 = vpop.f32.mrf.mxu0
        %v1088 = vadd.f32 %v1068, %v1087
        %1089 = vdwg.mxu0
        %vm1090 = vcmask 122880
        %1091 = vst.msk [vmem:[%s216] sm:$0x1] %vm1090, %v1088
        %s1092 = sand.u32 %s137, 1
        %s1093 = scalar_lea.sflag [#allocation3], %s1092
        %s1094 = sand.u32 %s137, 1
        %s1095 = scalar_lea.vmem [#allocation2], %s1094
        // Predicated region
        $region41: #{tpu_custom_call.1} parent=39 // pred_check
          %p1096 = pneg %p147
        $region42: #{tpu_custom_call.1} parent=39 // pred_check_branch
          %1098 = sbr.rel (%p1096) target = $region44
        $region43: #{tpu_custom_call.1} parent=39 // pred_region
          %1100 = vsyncadd %s1093, 0
          %s1101 = scalar_lea.hbm %s5, %s19
          %s1103 = sshll.u32 %s1095, 4
          %s1104 = int_to_ptr.vmem [resolvable:$true] %s1103
          %s1105 = sshll.u32 %s1101, 4
          %s1106 = int_to_ptr.hbm [resolvable:$true] %s1105
          %1108 = dma.vmem_to_hbm [thread:$0]  %s1104, 16, %s1106, %s1093
        $region44: #{tpu_custom_call.1} parent=39 // pred_fallthru
          _
      $region40: #{tpu_custom_call.1} parent=5 // pred_fallthru
        _
      %p1109 = scmp.le.s32.totalorder 2, %s14
      // Predicated region
      $region45: #{tpu_custom_call.1} parent=5 // pred_check
        %p1110 = pneg %p1109
      $region46: #{tpu_custom_call.1} parent=5 // pred_check_branch
        %1112 = sbr.rel (%p1110) target = $region48
      $region47: #{tpu_custom_call.1} parent=5 // pred_region
        %s1113 = ssub.s32 %s14, 2
        // Predicated region
        $region49: #{tpu_custom_call.1} parent=47 // pred_check
          %p1114 = pneg %p153
        $region50: #{tpu_custom_call.1} parent=47 // pred_check_branch
          %1116 = sbr.rel (%p1114) target = $region52
        $region51: #{tpu_custom_call.1} parent=47 // pred_region
          %s1117 = sand.u32 %s138, 1
          %s1118 = scalar_lea.sflag [#allocation3], %s1117
          %s1119 = sand.u32 %s138, 1
          %s1120 = scalar_lea.vmem [#allocation2], %s1119
          %1122 = dma.done %s1118, 16
        $region52: #{tpu_custom_call.1} parent=47 // pred_fallthru
          _
      $region48: #{tpu_custom_call.1} parent=5 // pred_fallthru
        _
    $region6: #{tpu_custom_call.1} parent=1 // loop_footer
      %s18 = sadd.s32 1, %s14
    $region7: #{tpu_custom_call.1} parent=1 // loop_footer_branch
      %13 = sbr.rel target = $region3
    $region8: #{tpu_custom_call.1} parent=1 // loop_exit
      _
    %1123 = vsyncpa [#allocation3], 1
    %s1124 = scalar_lea.sflag [#allocation3], 1
    %1125 = vsyncpa %s1124, 1

</llo_original>
